<compile_context>
chip_gen: v5e
topology: v5e:2x2
jax: 0.10.0
libtpu: 0.0.40
codegen_flags: <defaults>
</compile_context>

<pallas_src>
import jax
import jax.numpy as jnp
from jax import lax
from jax.experimental import pallas as pl
from jax.experimental.pallas import tpu as pltpu


def _sigmoid_kernel(params_ref, xi_ref, xj_ref, o_ref):
    # params_ref: (2,) f32 in SMEM -> [a, b]
    # xi_ref: (1, TM, D) VMEM   xj_ref: (1, TN, D) VMEM   o_ref: (1, TM, TN)
    a = params_ref[0]
    b = params_ref[1]
    xi = xi_ref[0]                     # (TM, D), native input dtype
    xj = xj_ref[0]                     # (TN, D), native input dtype
    # inner[i, j] = <x_i, x_j>: contract the feature axis on the MXU, f32 acc.
    inner = lax.dot_general(
        xi, xj,
        dimension_numbers=(((1,), (1,)), ((), ())),
        preferred_element_type=jnp.float32)
    o_ref[0] = jnp.tanh(a * inner + b).astype(o_ref.dtype)


_VMEM_BUDGET = 40 * 1024 * 1024        # working-set budget: fits v7x 64 MiB w/ headroom


def _plan_tiles(n, d, in_itemsize, out_itemsize, candidates=(512, 256, 128)):
    """Return (tile, padded_n, est_working_set_bytes)."""
    def working_set(t):
        # 2x double-buffering on each pipelined block: two (t, D) inputs + (t, t) out.
        return 2 * (2 * t * d * in_itemsize) + 2 * (t * t * out_itemsize)

    # Small N: one full-extent tile (exempt from the (8,128) rule), no padding.
    if n <= 256 and working_set(n) <= _VMEM_BUDGET:
        return n, n, working_set(n)

    # Larger N: pad to a 128 multiple (lane-dense output stores), pick the
    # largest MXU-friendly tile that divides padded N and fits the budget.
    padded = ((n + 127) // 128) * 128
    tile = 128
    for t in candidates:
        if padded % t == 0 and working_set(t) <= _VMEM_BUDGET:
            tile = t
            break
    # TODO(synk): for very large D (working_set(128) > budget) add a K-reduction
    #             grid axis over D with an f32 VMEM accumulator instead of full-D rows.
    return tile, padded, working_set(tile)


def sigmoid_kernel_layer(x, params):
    """x: [B, N, D]; params: [a, b]. Returns tanh(a * (x @ x^T) + b) per batch.

    Mirrors the PyTorch forward: if B == 1 the leading dim is squeezed
    (torch .squeeze(0)); otherwise the result is [B, N, N].
    """
    x = jnp.asarray(x)                          # keep native dtype (bf16 stays bf16)
    params = jnp.asarray(params, jnp.float32).reshape(2)
    B, N, D = x.shape
    out_dtype = x.dtype
    in_item = x.dtype.itemsize
    out_item = jnp.dtype(out_dtype).itemsize

    tile, padded_n, est_ws = _plan_tiles(N, D, in_item, out_item)
    x_p = x if padded_n == N else jnp.pad(x, ((0, 0), (0, padded_n - N), (0, 0)))

    grid = (B, padded_n // tile, padded_n // tile)

    vmem_limit = int(min(56 * 1024 * 1024, max(2 * est_ws, 16 * 1024 * 1024)))
    cost = pl.CostEstimate(
        flops=2 * B * padded_n * padded_n * D,
        transcendentals=B * padded_n * padded_n,
        bytes_accessed=(2 * B * padded_n * D * in_item
                        + B * padded_n * padded_n * out_item),
    )

    out = pl.pallas_call(
        _sigmoid_kernel,
        out_shape=jax.ShapeDtypeStruct((B, padded_n, padded_n), out_dtype),
        grid=grid,
        in_specs=[
            pl.BlockSpec(memory_space=pltpu.MemorySpace.SMEM),         # [a, b]
            pl.BlockSpec((1, tile, D), lambda b, i, j: (b, i, 0)),     # i-rows
            pl.BlockSpec((1, tile, D), lambda b, i, j: (b, j, 0)),     # j-rows
        ],
        out_specs=pl.BlockSpec((1, tile, tile), lambda b, i, j: (b, i, j)),
        compiler_params=pltpu.CompilerParams(
            dimension_semantics=("parallel", "parallel", "parallel"),
            vmem_limit_bytes=vmem_limit),
        cost_estimate=cost,
    )(params, x_p, x_p)                          # FIX: x passed for both row streams

    if padded_n != N:
        out = out[:, :N, :N]
    # torch.matmul(...).squeeze(0): drop leading dim only when it is size 1.
    return out[0] if B == 1 else out


# TODO(synk): has_pattern=True branch (learnable vct_h parameter) and the
#             tuple-input dispatch path are not implemented; only the default
#             constructor path (has_pattern=False, tensor input) is reproduced.


def _reference(x, params):
    # Pure-JAX reference mirroring the PyTorch forward exactly (f32 math).
    xf = jnp.asarray(x, jnp.float32)
    a, b = params[0], params[1]
    inner = jnp.einsum("bnd,bmd->bnm", xf, xf)   # x @ x^T per batch
    out = jnp.tanh(a * inner + b)
    return out[0] if x.shape[0] == 1 else out


if __name__ == "__main__":
    key = jax.random.PRNGKey(0)
    k1, k2 = jax.random.split(key)

    # Deterministic parameter init matching nn.Parameter(torch.ones(2)).
    params = jnp.ones((2,), jnp.float32)

    # Small shape consistent with the module's forward: [batch, seq, hidden].
    x_small = jax.random.normal(k1, (2, 8, 32), dtype=jnp.float32)
    out_small = jax.block_until_ready(sigmoid_kernel_layer(x_small, params))
    ref_small = _reference(x_small, params)
    assert out_small.shape == (2, 8, 8)
    assert jnp.allclose(out_small, ref_small, atol=1e-5, rtol=1e-5), \
        "mismatch vs reference (small f32)"

    # Exercises the tiled (B, N/T, N/T) grid and the squeeze(0) path.
    x_big = jax.random.normal(k2, (1, 384, 64), dtype=jnp.float32)
    out_big = jax.block_until_ready(sigmoid_kernel_layer(x_big, params))
    ref_big = _reference(x_big, params)
    assert out_big.shape == (384, 384)
    assert jnp.allclose(out_big, ref_big, atol=1e-5, rtol=1e-5), \
        "mismatch vs reference (tiled f32)"

    # Native-dtype path: bf16 operands on the MXU, bf16 output (looser tol).
    x_bf16 = x_small.astype(jnp.bfloat16)
    out_bf16 = jax.block_until_ready(sigmoid_kernel_layer(x_bf16, params))
    assert out_bf16.dtype == jnp.bfloat16
    ref_bf16 = _reference(x_bf16, params)
    assert jnp.allclose(out_bf16.astype(jnp.float32), ref_bf16,
                        atol=3e-2, rtol=3e-2), "mismatch vs reference (bf16)"

    print("KERNEL_OK")
</pallas_src>

<mosaic_0001>
module attributes {stable_mosaic.version = 11 : i64} {
  func.func @_sigmoid_kernel(%arg0: i32, %arg1: i32, %arg2: i32, %arg3: memref<2xf32, #tpu.memory_space<smem>>, %arg4: memref<1x8x32xf32, #tpu.memory_space<vmem>>, %arg5: memref<1x8x32xf32, #tpu.memory_space<vmem>>, %arg6: memref<1x8x8xf32, #tpu.memory_space<vmem>>) attributes {dimension_semantics = [#tpu.dimension_semantics<parallel>, #tpu.dimension_semantics<parallel>, #tpu.dimension_semantics<parallel>], iteration_bounds = array<i64: 2, 1, 1>, scalar_prefetch = 0 : i64, scratch_operands = 0 : i64, tpu.core_type = #tpu.core_type<tc>, window_params = [{transform_indices = @transform_0, window_bounds = array<i64: 2>}, {transform_indices = @transform_1, window_bounds = array<i64: 1, 8, 32>}, {transform_indices = @transform_2, window_bounds = array<i64: 1, 8, 32>}, {transform_indices = @transform_3, window_bounds = array<i64: 1, 8, 8>}]} {
    %c0 = arith.constant 0 : index
    %0 = memref.load %arg3[%c0] : memref<2xf32, #tpu.memory_space<smem>>
    %c1 = arith.constant 1 : index
    %1 = memref.load %arg3[%c1] : memref<2xf32, #tpu.memory_space<smem>>
    %c0_0 = arith.constant 0 : index
    %c0_1 = arith.constant 0 : index
    %c0_2 = arith.constant 0 : index
    %2 = vector.load %arg4[%c0_0, %c0_1, %c0_2] : memref<1x8x32xf32, #tpu.memory_space<vmem>>, vector<1x8x32xf32>
    %3 = vector.shape_cast %2 : vector<1x8x32xf32> to vector<8x32xf32>
    %c0_3 = arith.constant 0 : index
    %c0_4 = arith.constant 0 : index
    %c0_5 = arith.constant 0 : index
    %4 = vector.load %arg5[%c0_3, %c0_4, %c0_5] : memref<1x8x32xf32, #tpu.memory_space<vmem>>, vector<1x8x32xf32>
    %5 = vector.shape_cast %4 : vector<1x8x32xf32> to vector<8x32xf32>
    %cst = arith.constant dense<0.000000e+00> : vector<8x8xf32>
    %6 = tpu.matmul %3, %5, %cst {dimension_numbers = #tpu.dot_dimension_numbers<[1], [1], [0], [0], [0, 0, 1, 0], [], []>} : vector<8x32xf32>, vector<8x32xf32>, vector<8x8xf32> -> vector<8x8xf32>
    %7 = vector.broadcast %0 : f32 to vector<8x8xf32>
    %8 = arith.mulf %7, %6 : vector<8x8xf32>
    %9 = vector.broadcast %1 : f32 to vector<8x8xf32>
    %10 = arith.addf %8, %9 : vector<8x8xf32>
    %11 = math.tanh %10 : vector<8x8xf32>
    %c0_6 = arith.constant 0 : index
    %c0_7 = arith.constant 0 : index
    %c0_8 = arith.constant 0 : index
    %12 = vector.load %arg6[%c0_6, %c0_7, %c0_8] : memref<1x8x8xf32, #tpu.memory_space<vmem>>, vector<1x8x8xf32>
    %13 = vector.shape_cast %12 : vector<1x8x8xf32> to vector<8x8xf32>
    %14 = vector.shape_cast %11 : vector<8x8xf32> to vector<1x8x8xf32>
    tpu.vector_store %arg6[%c0_6, %c0_7, %c0_8], %14 {strides = array<i32>} : memref<1x8x8xf32, #tpu.memory_space<vmem>>, vector<1x8x8xf32>,
    return
  }
  func.func @transform_0(%arg0: i32, %arg1: i32, %arg2: i32) -> i32 {
    %c0_i32 = arith.constant 0 : i32
    %c0_i32_0 = arith.constant 0 : i32
    return %c0_i32 : i32
  }
  func.func @transform_1(%arg0: i32, %arg1: i32, %arg2: i32) -> (i32, i32, i32) {
    %c0_i32 = arith.constant 0 : i32
    %c0_i32_0 = arith.constant 0 : i32
    return %arg0, %arg1, %c0_i32 : i32, i32, i32
  }
  func.func @transform_2(%arg0: i32, %arg1: i32, %arg2: i32) -> (i32, i32, i32) {
    %c0_i32 = arith.constant 0 : i32
    %c0_i32_0 = arith.constant 0 : i32
    return %arg0, %arg2, %c0_i32 : i32, i32, i32
  }
  func.func @transform_3(%arg0: i32, %arg1: i32, %arg2: i32) -> (i32, i32, i32) {
    %c0_i32 = arith.constant 0 : i32
    return %arg0, %arg1, %arg2 : i32, i32, i32
  }
}

</mosaic_0001>

<llo_original>
// kernel: tpu_custom_call.1
$region0: #{tpu_custom_call.1}
  #allocation0 [shape = 'u32[]', space=smem, size = 0x4, offset = 0x4, fixed_abs, tag = 'smem constant byte address 0x4 - core index']
  #allocation1 [shape = 'u32[72,128]{1,0:T(1,128)}', space=vmem, size = 0x9000, scoped, tag = 'internal scratch']
  %s0 = inlined_call_operand.hbm [shape: f32[2], index: 0, kind: input, shape index: {}]
  %s1 = inlined_call_operand.hbm [shape: f32[2,8,32], index: 1, kind: input, shape index: {}]
  %s2 = inlined_call_operand.hbm [shape: f32[2,8,32], index: 2, kind: input, shape index: {}]
  %s3 = inlined_call_operand.hbm [shape: f32[2,8,8], index: 3, kind: output, shape index: {}]
  %s4 = sld [smem:[#allocation0]]
  $region57: #{tpu_custom_call.1} parent=0
    _
  %s6 = ssub.s32 1, %s4
  %s7 = scalar_select 0, %s6, %s4
  $region1: #{tpu_custom_call.1} parent=0
    #allocation2 [shape = 'u8[512]{0}', space=smem, size = 0x200, scoped, tag = 'input window, operand 0, single buffered']
    #allocation3 [shape = 's32[2]{0}', space=sflag, size = 0x8, scoped, tag = 'scoped memory for tpu_custom_call.1']
    #allocation4 [shape = 's32[2]{0}', space=sflag, size = 0x8, scoped, tag = 'scoped memory for tpu_custom_call.1']
    #allocation5 [shape = 's32[2]{0}', space=sflag, size = 0x8, scoped, tag = 'scoped memory for tpu_custom_call.1']
    #allocation6 [shape = 'u8[8192]{0}', space=vmem, size = 0x2000, scoped, tag = 'input window, operand 1']
    #allocation7 [shape = 'u8[8192]{0}', space=vmem, size = 0x2000, scoped, tag = 'input window, operand 2']
    #allocation8 [shape = 's32[2]{0}', space=sflag, size = 0x8, scoped, tag = 'scoped memory for tpu_custom_call.1']
    #allocation9 [shape = 'u8[8192]{0}', space=vmem, size = 0x2000, scoped, tag = 'output window, operand 0']
    %8 = vsyncpa [#allocation5], 0
    %9 = vsyncpa [#allocation3], 0
    %s10 = scalar_lea.sflag [#allocation3], 1
    %11 = vsyncpa %s10, 0
    %12 = vsyncpa [#allocation8], 0
    %s13 = scalar_lea.sflag [#allocation8], 1
    %14 = vsyncpa %s13, 0
    %15 = vsyncpa [#allocation4], 0
    %s16 = scalar_lea.sflag [#allocation4], 1
    %17 = vsyncpa %s16, 0
    loop: start=0, step=1, limit=4
    $region2: #{tpu_custom_call.1} parent=1 // loop_pre_header
      _
    $region3: #{tpu_custom_call.1} parent=1 // loop_header
      %s19 = sphi 0, %s23
      %p20 = scmp.ge.s32.totalorder %s19, 4
      %s26 = sphi 0, %s45
      %s27 = sphi 0, %s41
      %s28 = sphi 0, %s37
      %s29 = sphi 0, %s26
      %s30 = sphi 0, %s27
      %s31 = sphi 0, %s28
      %s32 = sphi 0, %s29
      %s33 = sphi 0, %s30
      %s34 = sphi 0, %s31
      %s46 = sphi 0, %s46
      %s48 = sphi 0, %s46
      %s49 = sphi 0, %s48
      %s63 = sphi 0, %s49
      %s71 = sphi 0, %s73
      %s74 = sphi 0, %s71
      %s75 = sphi 0, %s74
      %s91 = sphi 0, %s75
      %s99 = sphi 0, %s101
      %s102 = sphi 0, %s99
      %s103 = sphi 0, %s102
      %s119 = sphi 0, %s103
      %s129 = sphi 0, %s131
      %s132 = sphi 0, %s129
      %s133 = sphi 0, %s132
      %s149 = sphi 0, %s133
    $region4: #{tpu_custom_call.1} parent=1 // loop_header_branch
      %22 = sbr.rel (%p20) target = $region8
    $region5: #{tpu_custom_call.1} parent=1 // loop_body
      %s24 = ssub.s32 %s19, 1
      %s25 = ssub.s32 %s19, 2
      %s35 = sadd.s32 1, %s28
      %p36 = scmp.ge.s32.totalorder %s35, 1
      %s37 = scalar_select %p36, 0, %s35
      %s38 = sadd.s32 1, %s27
      %s39 = scalar_select %p36, %s38, %s27
      %p40 = scmp.ge.s32.totalorder %s39, 1
      %s41 = scalar_select %p40, 0, %s39
      %s42 = sadd.s32 1, %s26
      %s43 = scalar_select %p40, %s42, %s26
      %p44 = scmp.ge.s32.totalorder %s43, 2
      %s45 = scalar_select %p44, 0, %s43
      %s47 = sadd.s32 %s46, 1
      %p50 = scmp.eq.s32.totalorder %s19, 1
      %p51 = scmp.ne.s32.totalorder %s46, %s48
      %p52 = scmp.eq.s32.totalorder %s19, 0
      %p53 = por %p51, %p52
      %p54 = scmp.ne.s32.totalorder %s46, %s48
      %p55 = scmp.eq.s32.totalorder %s24, 1
      %p56 = por %p54, %p55
      %p57 = scmp.ne.s32.totalorder %s48, %s49
      %p58 = scmp.eq.s32.totalorder %s24, 0
      %p59 = por %p57, %p58
      %p60 = scmp.ne.s32.totalorder %s48, %s49
      %p61 = scmp.eq.s32.totalorder %s25, 1
      %p62 = por %p60, %p61
      %p64 = scmp.ne.s32.totalorder %s49, %s63
      %p65 = scmp.eq.s32.totalorder %s25, 0
      %p66 = por %p64, %p65
      %s67 = ssub.s32 %s26, %s45
      %s68 = ssub.s32 %s27, %s41
      %s69 = sor.u32 %s67, %s68
      %p70 = scmp.eq.s32.totalorder %s69, 0
      %s72 = sadd.s32 %s71, 1
      %s73 = scalar_select %p70, %s71, %s72
      %p76 = pneg %p70
      %p77 = scmp.eq.s32.totalorder %s19, 1
      %p78 = por %p76, %p77
      %p79 = scmp.ne.s32.totalorder %s71, %s74
      %p80 = scmp.eq.s32.totalorder %s19, 0
      %p81 = por %p79, %p80
      %p82 = scmp.ne.s32.totalorder %s71, %s74
      %p83 = scmp.eq.s32.totalorder %s24, 1
      %p84 = por %p82, %p83
      %p85 = scmp.ne.s32.totalorder %s74, %s75
      %p86 = scmp.eq.s32.totalorder %s24, 0
      %p87 = por %p85, %p86
      %p88 = scmp.ne.s32.totalorder %s74, %s75
      %p89 = scmp.eq.s32.totalorder %s25, 1
      %p90 = por %p88, %p89
      %p92 = scmp.ne.s32.totalorder %s75, %s91
      %p93 = scmp.eq.s32.totalorder %s25, 0
      %p94 = por %p92, %p93
      %s95 = ssub.s32 %s26, %s45
      %s96 = ssub.s32 %s28, %s37
      %s97 = sor.u32 %s95, %s96
      %p98 = scmp.eq.s32.totalorder %s97, 0
      %s100 = sadd.s32 %s99, 1
      %s101 = scalar_select %p98, %s99, %s100
      %p104 = pneg %p98
      %p105 = scmp.eq.s32.totalorder %s19, 1
      %p106 = por %p104, %p105
      %p107 = scmp.ne.s32.totalorder %s99, %s102
      %p108 = scmp.eq.s32.totalorder %s19, 0
      %p109 = por %p107, %p108
      %p110 = scmp.ne.s32.totalorder %s99, %s102
      %p111 = scmp.eq.s32.totalorder %s24, 1
      %p112 = por %p110, %p111
      %p113 = scmp.ne.s32.totalorder %s102, %s103
      %p114 = scmp.eq.s32.totalorder %s24, 0
      %p115 = por %p113, %p114
      %p116 = scmp.ne.s32.totalorder %s102, %s103
      %p117 = scmp.eq.s32.totalorder %s25, 1
      %p118 = por %p116, %p117
      %p120 = scmp.ne.s32.totalorder %s103, %s119
      %p121 = scmp.eq.s32.totalorder %s25, 0
      %p122 = por %p120, %p121
      %s123 = ssub.s32 %s26, %s45
      %s124 = ssub.s32 %s27, %s41
      %s125 = sor.u32 %s123, %s124
      %s126 = ssub.s32 %s28, %s37
      %s127 = sor.u32 %s125, %s126
      %p128 = scmp.eq.s32.totalorder %s127, 0
      %s130 = sadd.s32 %s129, 1
      %s131 = scalar_select %p128, %s129, %s130
      %p134 = pneg %p128
      %p135 = scmp.eq.s32.totalorder %s19, 1
      %p136 = por %p134, %p135
      %p137 = scmp.ne.s32.totalorder %s129, %s132
      %p138 = scmp.eq.s32.totalorder %s19, 0
      %p139 = por %p137, %p138
      %p140 = scmp.ne.s32.totalorder %s129, %s132
      %p141 = scmp.eq.s32.totalorder %s24, 1
      %p142 = por %p140, %p141
      %p143 = scmp.ne.s32.totalorder %s132, %s133
      %p144 = scmp.eq.s32.totalorder %s24, 0
      %p145 = por %p143, %p144
      %p146 = scmp.ne.s32.totalorder %s132, %s133
      %p147 = scmp.eq.s32.totalorder %s25, 1
      %p148 = por %p146, %p147
      %p150 = scmp.ne.s32.totalorder %s133, %s149
      %p151 = scmp.eq.s32.totalorder %s25, 0
      %p152 = por %p150, %p151
      %p153 = scmp.le.s32.totalorder 1, %s19
      %p154 = scmp.lt.s32.totalorder %s19, 3
      %p155 = pnand %p153, %p154
      %p156 = pneg %p155
      // Predicated region
      $region9: #{tpu_custom_call.1} parent=5 // pred_check
        _
      $region10: #{tpu_custom_call.1} parent=5 // pred_check_branch
        %158 = sbr.rel (%p155) target = $region12
      $region11: #{tpu_custom_call.1} parent=5 // pred_region
        %s159 = ssub.s32 %s19, 1
        // Predicated region
        $region13: #{tpu_custom_call.1} parent=11 // pred_check
          %p160 = pneg %p59
        $region14: #{tpu_custom_call.1} parent=11 // pred_check_branch
          %162 = sbr.rel (%p160) target = $region16
        $region15: #{tpu_custom_call.1} parent=11 // pred_region
          %164 = vsyncadd [#allocation5], 0
          %s166 = sshll.u32 %s0, 4
          %s167 = int_to_ptr.hbm [resolvable:$true] %s166
          %169 = dma.hbm_to_smem %s167, 16, [#allocation2], [#allocation5]
        $region16: #{tpu_custom_call.1} parent=11 // pred_fallthru
          _
      $region12: #{tpu_custom_call.1} parent=5 // pred_fallthru
        _
      %p170 = scmp.lt.s32.totalorder %s19, 2
      // Predicated region
      $region17: #{tpu_custom_call.1} parent=5 // pred_check
        %p171 = pneg %p170
      $region18: #{tpu_custom_call.1} parent=5 // pred_check_branch
        %173 = sbr.rel (%p171) target = $region20
      $region19: #{tpu_custom_call.1} parent=5 // pred_region
        // Predicated region
        $region21: #{tpu_custom_call.1} parent=19 // pred_check
          %p174 = pneg %p81
        $region22: #{tpu_custom_call.1} parent=19 // pred_check_branch
          %176 = sbr.rel (%p174) target = $region24
        $region23: #{tpu_custom_call.1} parent=19 // pred_region
          %s177 = sand.u32 %s71, 1
          %s178 = scalar_lea.sflag [#allocation3], %s177
          %s179 = sand.u32 %s71, 1
          %s180 = smul.addr %s179, 8
          %s181 = scalar_lea.vmem [#allocation6], %s180
          %183 = vsyncadd %s178, 0
          %s184 = sadd.s32 %s27, %s26
          %s185 = smul.addr %s184, 8
          %s186 = scalar_lea.hbm %s1, %s185
          %s188 = sshll.u32 %s186, 4
          %s189 = int_to_ptr.hbm [resolvable:$true] %s188
          %s190 = sshll.u32 %s181, 4
          %s191 = int_to_ptr.vmem [resolvable:$true] %s190
          %193 = dma.hbm_to_vmem [thread:$0]  %s189, 128, %s191, %s178
        $region24: #{tpu_custom_call.1} parent=19 // pred_fallthru
          _
        // Predicated region
        $region25: #{tpu_custom_call.1} parent=19 // pred_check
          %p194 = pneg %p109
        $region26: #{tpu_custom_call.1} parent=19 // pred_check_branch
          %196 = sbr.rel (%p194) target = $region28
        $region27: #{tpu_custom_call.1} parent=19 // pred_region
          %s197 = sand.u32 %s99, 1
          %s198 = scalar_lea.sflag [#allocation8], %s197
          %s199 = sand.u32 %s99, 1
          %s200 = smul.addr %s199, 8
          %s201 = scalar_lea.vmem [#allocation7], %s200
          %203 = vsyncadd %s198, 0
          %s204 = sadd.s32 %s28, %s26
          %s205 = smul.addr %s204, 8
          %s206 = scalar_lea.hbm %s2, %s205
          %s208 = sshll.u32 %s206, 4
          %s209 = int_to_ptr.hbm [resolvable:$true] %s208
          %s210 = sshll.u32 %s201, 4
          %s211 = int_to_ptr.vmem [resolvable:$true] %s210
          %213 = dma.hbm_to_vmem [thread:$0]  %s209, 128, %s211, %s198
        $region28: #{tpu_custom_call.1} parent=19 // pred_fallthru
          _
      $region20: #{tpu_custom_call.1} parent=5 // pred_fallthru
        _
      %p214 = scmp.le.s32.totalorder 1, %s19
      %p215 = scmp.lt.s32.totalorder %s19, 3
      %p216 = pnand %p214, %p215
      %p217 = pneg %p216
      // Predicated region
      $region29: #{tpu_custom_call.1} parent=5 // pred_check
        _
      $region30: #{tpu_custom_call.1} parent=5 // pred_check_branch
        %219 = sbr.rel (%p216) target = $region32
      $region31: #{tpu_custom_call.1} parent=5 // pred_region
        %s220 = ssub.s32 %s19, 1
        // Predicated region
        $region33: #{tpu_custom_call.1} parent=31 // pred_check
          %p221 = pneg %p59
        $region34: #{tpu_custom_call.1} parent=31 // pred_check_branch
          %223 = sbr.rel (%p221) target = $region36
        $region35: #{tpu_custom_call.1} parent=31 // pred_region
          %225 = dma.done [#allocation5], 16
        $region36: #{tpu_custom_call.1} parent=31 // pred_fallthru
          _
        %s226 = sand.u32 %s74, 1
        %s227 = scalar_lea.sflag [#allocation3], %s226
        %s228 = sand.u32 %s74, 1
        %s229 = smul.addr %s228, 8
        %s230 = scalar_lea.vmem [#allocation6], %s229
        // Predicated region
        $region37: #{tpu_custom_call.1} parent=31 // pred_check
          %p231 = pneg %p87
        $region38: #{tpu_custom_call.1} parent=31 // pred_check_branch
          %233 = sbr.rel (%p231) target = $region40
        $region39: #{tpu_custom_call.1} parent=31 // pred_region
          %235 = dma.done %s227, 128
        $region40: #{tpu_custom_call.1} parent=31 // pred_fallthru
          _
        %s236 = sand.u32 %s102, 1
        %s237 = scalar_lea.sflag [#allocation8], %s236
        %s238 = sand.u32 %s102, 1
        %s239 = smul.addr %s238, 8
        %s240 = scalar_lea.vmem [#allocation7], %s239
        // Predicated region
        $region41: #{tpu_custom_call.1} parent=31 // pred_check
          %p241 = pneg %p115
        $region42: #{tpu_custom_call.1} parent=31 // pred_check_branch
          %243 = sbr.rel (%p241) target = $region44
        $region43: #{tpu_custom_call.1} parent=31 // pred_region
          %245 = dma.done %s237, 128
        $region44: #{tpu_custom_call.1} parent=31 // pred_fallthru
          _
        %246 = sfence
        %p247 = pneg %p59
        %p248 = pneg %p56
        %s249 = sand.u32 %s74, 1
        %s250 = scalar_lea.sflag [#allocation3], %s249
        %s251 = sand.u32 %s74, 1
        %s252 = smul.addr %s251, 8
        %s253 = scalar_lea.vmem [#allocation6], %s252
        %p254 = pneg %p87
        %p255 = pneg %p84
        %s256 = sand.u32 %s102, 1
        %s257 = scalar_lea.sflag [#allocation8], %s256
        %s258 = sand.u32 %s102, 1
        %s259 = smul.addr %s258, 8
        %s260 = scalar_lea.vmem [#allocation7], %s259
        %p261 = pneg %p115
        %p262 = pneg %p112
        %p263 = pneg %p145
        %p264 = pneg %p142
        %s265 = sand.u32 %s132, 1
        %s266 = scalar_lea.sflag [#allocation4], %s265
        %s267 = sand.u32 %s132, 1
        %s268 = smul.addr %s267, 8
        %s269 = scalar_lea.vmem [#allocation9], %s268
        %s270 = sld [smem:[#allocation2]]
        %s271 = sld [smem:[#allocation2 + $0x1]]
        %v272 = vld [vmem:[%s230] sm:$0xff]
        %v273 = vld [vmem:[%s240] sm:$0xff]
        %vm274 = vcmask 261120
        %v276 = vsel %vm274, %v272, 0
        %v279 = vsel %vm274, %v273, 0
        %281 = vmatpush.xpose.msra.mxu0 0.0
        %282 = vmatpush.xpose.msra.mxu0 0.0
        %283 = vmatpush.xpose.msra.mxu0 0.0
        %284 = vmatpush.xpose.msra.mxu0 0.0
        %285 = vmatpush.xpose.msra.mxu0 0.0
        %286 = vmatpush.xpose.msra.mxu0 0.0
        %287 = vmatpush.xpose.msra.mxu0 0.0
        %288 = vmatpush.xpose.msra.mxu0 0.0
        %289 = vmatpush.xpose.msra.mxu0 0.0
        %290 = vmatpush.xpose.msra.mxu0 0.0
        %291 = vmatpush.xpose.msra.mxu0 0.0
        %292 = vmatpush.xpose.msra.mxu0 0.0
        %293 = vmatpush.xpose.msra.mxu0 0.0
        %294 = vmatpush.xpose.msra.mxu0 0.0
        %295 = vmatpush.xpose.msra.mxu0 0.0
        %296 = vmatpush.xpose.msra.mxu0 %v279
        %297 = vmatmul.f32.gmra.mxu0 %v276
        %v298 = vpop.f32.mrf.mxu0
        %v299 = vadd.f32 0.0, %v298
        %300 = vdwg.mxu0
        %v301 = vstv %s270
        %v302 = vmul.f32 %v301, %v299
        %v303 = vstv %s271
        %v304 = vadd.f32 %v302, %v303
        %v305 = vtanh.pop %v304
        %vm306 = vcmask 64512
        %307 = vst.msk [vmem:[%s269] sm:$0xff] %vm306, %v305
        %s308 = sand.u32 %s132, 1
        %s309 = scalar_lea.sflag [#allocation4], %s308
        %s310 = sand.u32 %s132, 1
        %s311 = smul.addr %s310, 8
        %s312 = scalar_lea.vmem [#allocation9], %s311
        // Predicated region
        $region45: #{tpu_custom_call.1} parent=31 // pred_check
          %p313 = pneg %p142
        $region46: #{tpu_custom_call.1} parent=31 // pred_check_branch
          %315 = sbr.rel (%p313) target = $region48
        $region47: #{tpu_custom_call.1} parent=31 // pred_region
          %317 = vsyncadd %s309, 0
          %s318 = sadd.s32 %s31, %s30
          %s319 = sadd.s32 %s318, %s29
          %s320 = smul.addr %s319, 8
          %s321 = scalar_lea.hbm %s3, %s320
          %s323 = sshll.u32 %s312, 4
          %s324 = int_to_ptr.vmem [resolvable:$true] %s323
          %s325 = sshll.u32 %s321, 4
          %s326 = int_to_ptr.hbm [resolvable:$true] %s325
          %328 = dma.vmem_to_hbm [thread:$0]  %s324, 128, %s326, %s309
        $region48: #{tpu_custom_call.1} parent=31 // pred_fallthru
          _
      $region32: #{tpu_custom_call.1} parent=5 // pred_fallthru
        _
      %p329 = scmp.le.s32.totalorder 2, %s19
      // Predicated region
      $region49: #{tpu_custom_call.1} parent=5 // pred_check
        %p330 = pneg %p329
      $region50: #{tpu_custom_call.1} parent=5 // pred_check_branch
        %332 = sbr.rel (%p330) target = $region52
      $region51: #{tpu_custom_call.1} parent=5 // pred_region
        %s333 = ssub.s32 %s19, 2
        // Predicated region
        $region53: #{tpu_custom_call.1} parent=51 // pred_check
          %p334 = pneg %p148
        $region54: #{tpu_custom_call.1} parent=51 // pred_check_branch
          %336 = sbr.rel (%p334) target = $region56
        $region55: #{tpu_custom_call.1} parent=51 // pred_region
          %s337 = sand.u32 %s133, 1
          %s338 = scalar_lea.sflag [#allocation4], %s337
          %s339 = sand.u32 %s133, 1
          %s340 = smul.addr %s339, 8
          %s341 = scalar_lea.vmem [#allocation9], %s340
          %343 = dma.done %s338, 128
        $region56: #{tpu_custom_call.1} parent=51 // pred_fallthru
          _
      $region52: #{tpu_custom_call.1} parent=5 // pred_fallthru
        _
    $region6: #{tpu_custom_call.1} parent=1 // loop_footer
      %s23 = sadd.s32 1, %s19
    $region7: #{tpu_custom_call.1} parent=1 // loop_footer_branch
      %18 = sbr.rel target = $region3
    $region8: #{tpu_custom_call.1} parent=1 // loop_exit
      _
    %344 = vsyncpa [#allocation3], 1
    %s345 = scalar_lea.sflag [#allocation3], 1
    %346 = vsyncpa %s345, 1
    %347 = vsyncpa [#allocation8], 1
    %s348 = scalar_lea.sflag [#allocation8], 1
    %349 = vsyncpa %s348, 1
    %350 = vsyncpa [#allocation4], 1
    %s351 = scalar_lea.sflag [#allocation4], 1
    %352 = vsyncpa %s351, 1
    %353 = vsyncpa [#allocation5], 1
    %s354 = scalar_lea.sflag [#allocation5], 1
    %355 = vsyncpa %s354, 1

</llo_original>
